<compile_context>
chip_gen: v7x
topology: tpu7x:2x2x1
jax: 0.10.0
libtpu: 0.0.40
codegen_flags: <defaults>
</compile_context>

<pallas_src>
import functools

import jax
import jax.numpy as jnp
import numpy as np
from jax.experimental import pallas as pl
from jax.experimental.pallas import tpu as pltpu

EPS = 1e-8  # torch.nn.CosineSimilarity default eps


def _proto_audio_kernel(e_ref, esq_ref, a_ref, pt_ref, psq_ref, w_ref, b_ref, o_ref):
    """cosine-sim matmul (MXU, bf16) + rsqrt normalize (EUP) + audio linear (MXU) + add."""
    e = e_ref[...]          # (TN, D)  bf16
    e_sq = esq_ref[...]     # (TN, 1)  f32  (computed from f32 embeddings)
    a = a_ref[...]          # (TN, F)  bf16
    pt = pt_ref[...]        # (D,  K)  bf16  prototypes^T (resident)
    psq = psq_ref[...]      # (1,  K)  f32   ||p||^2 (resident)
    w = w_ref[...]          # (F,  K)  bf16  audio weight (resident)
    b = b_ref[...]          # (1,  K)  f32   1 + audio bias (resident)

    # shifted cosine similarity: 1 + (e . p) / max(||e||*||p||, eps)
    #   = 1 + (e . p) * rsqrt(max(||e||^2 * ||p||^2, eps^2))
    dots = jnp.dot(e, pt, preferred_element_type=jnp.float32)        # (TN, K)  MXU bf16
    inv_denom = jax.lax.rsqrt(jnp.maximum(e_sq * psq, EPS * EPS))    # (TN, K)  EUP rsqrt

    audio = jnp.dot(a, w, preferred_element_type=jnp.float32)        # (TN, K)  MXU bf16

    o_ref[...] = b + dots * inv_denom + audio                        # (TN, K)  f32 store


def prepare_params(prototypes, audio_w, audio_b=None, compute_dtype=jnp.bfloat16):
    """One-time weight prep (call at load time, NOT per forward call).

    prototypes: f32 [K, D]   audio_w: f32 [F, D]   audio_b: f32 [D] / [1, D] / None
    """
    prototypes = jnp.asarray(prototypes, jnp.float32)
    K = prototypes.shape[0]
    proto_t = prototypes.T.astype(compute_dtype)                               # (D, K)
    p_sq = jnp.sum(prototypes * prototypes, axis=-1).reshape(1, K)             # (1, K) f32
    w = jnp.asarray(audio_w, jnp.float32).astype(compute_dtype)                # (F, K)
    if audio_b is None:
        bias_row = jnp.ones((1, K), jnp.float32)
    else:
        bias_row = 1.0 + jnp.asarray(audio_b, jnp.float32).reshape(1, K)
    return proto_t, p_sq, w, bias_row


@functools.partial(jax.jit, static_argnames=("tile_n",))
def proto_embedding_with_audio(o_idxs, audio_features, emb_table,
                               proto_t, p_sq, audio_w, bias_row, tile_n=1024):
    """
    o_idxs:         int32 [B] or [B, n_neg_p_1]
    audio_features: f32   o_idxs.shape + [F]
    emb_table:      f32   [n_objects, D]
    proto_t/p_sq/audio_w/bias_row: outputs of prepare_params()
    returns:        f32   o_idxs.shape + [K]
    """
    D = emb_table.shape[1]
    K = proto_t.shape[1]
    F = audio_features.shape[-1]
    cdtype = proto_t.dtype

    lead_shape = o_idxs.shape
    idx_flat = o_idxs.reshape(-1).astype(jnp.int32)            # [N]
    N = idx_flat.shape[0]

    # --- row tiling: one step for tiny N, >= 2 steps otherwise (v7x megacore) ---
    def _round8(x):
        return max(8, ((x + 7) // 8) * 8)

    if N <= 256:
        tn = _round8(N)                                        # whole problem, one step
    else:
        tn = min(tile_n, _round8(pl.cdiv(N, 2)))               # at least two row blocks
    pad_rows = (-N) % tn
    Np = N + pad_rows

    # pad the cheap [N] index vector (not the [N, D] embedding matrix)
    if pad_rows:
        idx_flat = jnp.pad(idx_flat, (0, pad_rows))            # pad idx -> gathers row 0
    o_embed_f32 = jnp.take(emb_table, idx_flat, axis=0)        # [Np, D] f32 gather (XLA glue)
    e_sq = jnp.sum(o_embed_f32 * o_embed_f32, axis=-1,
                   keepdims=True)                              # [Np, 1] f32 (from f32 embeds)
    o_embed = o_embed_f32.astype(cdtype)                       # [Np, D] bf16 streamed copy

    a_flat = audio_features.reshape(-1, F)
    if pad_rows:
        a_flat = jnp.pad(a_flat, ((0, pad_rows), (0, 0)))
    a_flat = a_flat.astype(cdtype)                             # [Np, F] bf16

    bytes_streamed = (Np * D * o_embed.dtype.itemsize          # embeddings in
                      + Np * 4                                 # ||e||^2 in
                      + Np * F * a_flat.dtype.itemsize         # audio in
                      + Np * K * 4)                            # output
    cost = pl.CostEstimate(flops=2 * Np * (D + F) * K,
                           transcendentals=Np * K,
                           bytes_accessed=bytes_streamed)

    out = pl.pallas_call(
        _proto_audio_kernel,
        out_shape=jax.ShapeDtypeStruct((Np, K), jnp.float32),
        grid_spec=pltpu.PrefetchScalarGridSpec(
            num_scalar_prefetch=0,
            grid=(Np // tn,),
            in_specs=[
                pl.BlockSpec((tn, D), lambda i: (i, 0)),       # embeddings tile (bf16)
                pl.BlockSpec((tn, 1), lambda i: (i, 0)),       # ||e||^2 tile (f32)
                pl.BlockSpec((tn, F), lambda i: (i, 0)),       # audio features tile (bf16)
                pl.BlockSpec((D, K), lambda i: (0, 0)),        # prototypes^T (resident)
                pl.BlockSpec((1, K), lambda i: (0, 0)),        # ||p||^2 (resident)
                pl.BlockSpec((F, K), lambda i: (0, 0)),        # audio weight (resident)
                pl.BlockSpec((1, K), lambda i: (0, 0)),        # 1 + bias (resident)
            ],
            out_specs=pl.BlockSpec((tn, K), lambda i: (i, 0)),
        ),
        compiler_params=pltpu.CompilerParams(
            dimension_semantics=("parallel",)),
        cost_estimate=cost,
    )(o_embed, e_sq, a_flat, proto_t, p_sq, audio_w, bias_row)

    if pad_rows:
        out = out[:N]
    return out.reshape(lead_shape + (K,))


# TODO(synk): the regularization terms (_acc_r_batch / _acc_r_proto) are internal
# state side-effects of forward(), not part of the returned tensor; computed here
# in plain JAX for fidelity but not folded into the kernel output.
def reg_losses(sim_flat):
    # reg_batch_type='soft', reg_proto_type='soft' (defaults)
    def entropy_reg(x, axis):
        coeff = jax.nn.softmax(x, axis=axis)
        return -(coeff * jnp.log(coeff)).sum(axis=axis).mean()
    return entropy_reg(sim_flat, 1), entropy_reg(sim_flat, 0)


def _reference_f32(o_idxs, audio_features, emb_table, prototypes, audio_w, audio_b=None):
    """Pure-f32 reference (matches the torch module bit-for-bit in f32 math)."""
    e = emb_table[o_idxs]                                      # [..., D]
    dots = jnp.einsum("...d,kd->...k", e, prototypes)
    en = jnp.sqrt(jnp.sum(e * e, -1, keepdims=True))
    pn = jnp.sqrt(jnp.sum(prototypes * prototypes, -1))
    sim = 1.0 + dots / jnp.maximum(en * pn, EPS)
    audio = audio_features @ audio_w
    if audio_b is not None:
        audio = audio + jnp.reshape(audio_b, (-1,))
    return sim + audio


def _reference_mixed(o_idxs, audio_features, emb_table, prototypes, audio_w,
                     audio_b=None, compute_dtype=jnp.bfloat16):
    """Reference with the same bf16 matmul inputs / f32 accumulation as the kernel."""
    e = emb_table[o_idxs]                                      # f32
    e_sq = jnp.sum(e * e, -1, keepdims=True)
    p_sq = jnp.sum(prototypes * prototypes, -1)
    dots = jnp.einsum("...d,kd->...k", e.astype(compute_dtype),
                      prototypes.astype(compute_dtype),
                      preferred_element_type=jnp.float32)
    sim = 1.0 + dots * jax.lax.rsqrt(jnp.maximum(e_sq * p_sq, EPS * EPS))
    audio = jnp.einsum("...f,fk->...k", audio_features.astype(compute_dtype),
                       audio_w.astype(compute_dtype),
                       preferred_element_type=jnp.float32)
    out = sim + audio
    if audio_b is not None:
        out = out + jnp.reshape(audio_b, (-1,))
    return out


if __name__ == "__main__":
    key = jax.random.PRNGKey(0)
    k1, k2, k3, k4, k5 = jax.random.split(key, 5)

    n_objects = 50
    embedding_dim = 32          # n_prototypes=None -> K = D = 32
    audio_feature_dim = 13
    batch, n_neg_p_1 = 2, 4

    # deterministic "parameters" (synthetic init, matching __init__ shapes)
    emb_table = jax.random.normal(k1, (n_objects, embedding_dim), jnp.float32)
    prototypes = jax.random.normal(k2, (embedding_dim, embedding_dim), jnp.float32)
    audio_w = (jax.random.normal(k3, (audio_feature_dim, embedding_dim), jnp.float32)
               * (1.0 / np.sqrt(audio_feature_dim)))
    audio_b = None                                      # use_audio_bias=False

    # inputs
    o_idxs = jax.random.randint(k4, (batch, n_neg_p_1), 0, n_objects, jnp.int32)
    audio_features = jax.random.normal(
        k5, (batch, n_neg_p_1, audio_feature_dim), jnp.float32)

    # one-time weight prep (hoisted out of the per-call path)
    proto_t, p_sq, w_c, bias_row = prepare_params(prototypes, audio_w, audio_b)

    out = proto_embedding_with_audio(
        o_idxs, audio_features, emb_table, proto_t, p_sq, w_c, bias_row)
    out = jax.block_until_ready(out)

    # tight check against a reference using the same bf16 matmul inputs
    ref_mixed = _reference_mixed(o_idxs, audio_features, emb_table, prototypes,
                                 audio_w, audio_b)
    np.testing.assert_allclose(np.asarray(out), np.asarray(ref_mixed),
                               rtol=1e-4, atol=1e-4)

    # looser check against the pure-f32 reference (bf16 streaming precision)
    ref_f32 = _reference_f32(o_idxs, audio_features, emb_table, prototypes,
                             audio_w, audio_b)
    np.testing.assert_allclose(np.asarray(out), np.asarray(ref_f32),
                               rtol=5e-2, atol=5e-2)

    # side-effect reg losses (plain JAX, fidelity only)
    e_f32 = emb_table[o_idxs.reshape(-1)]
    sim_flat = 1.0 + (e_f32 @ prototypes.T) / jnp.maximum(
        jnp.linalg.norm(e_f32, axis=-1, keepdims=True)
        * jnp.linalg.norm(prototypes, axis=-1), EPS)
    _ = jax.block_until_ready(reg_losses(sim_flat))

    print("KERNEL_OK")
</pallas_src>

<mosaic_0001>
module attributes {stable_mosaic.version = 11 : i64} {
  func.func @_proto_audio_kernel(%arg0: i32, %arg1: memref<8x32xbf16, #tpu.memory_space<vmem>>, %arg2: memref<8x1xf32, #tpu.memory_space<vmem>>, %arg3: memref<8x13xbf16, #tpu.memory_space<vmem>>, %arg4: memref<32x32xbf16, #tpu.memory_space<vmem>>, %arg5: memref<1x32xf32, #tpu.memory_space<vmem>>, %arg6: memref<13x32xbf16, #tpu.memory_space<vmem>>, %arg7: memref<1x32xf32, #tpu.memory_space<vmem>>, %arg8: memref<8x32xf32, #tpu.memory_space<vmem>>) attributes {dimension_semantics = [#tpu.dimension_semantics<parallel>], iteration_bounds = array<i64: 1>, scalar_prefetch = 0 : i64, scratch_operands = 0 : i64, tpu.core_type = #tpu.core_type<tc>, window_params = [{transform_indices = @transform_0, window_bounds = array<i64: 8, 32>}, {transform_indices = @transform_1, window_bounds = array<i64: 8, 1>}, {transform_indices = @transform_2, window_bounds = array<i64: 8, 13>}, {pipeline_mode = #tpu.pipeline_mode<synchronous>, transform_indices = @transform_3, window_bounds = array<i64: 32, 32>}, {pipeline_mode = #tpu.pipeline_mode<synchronous>, transform_indices = @transform_4, window_bounds = array<i64: 1, 32>}, {pipeline_mode = #tpu.pipeline_mode<synchronous>, transform_indices = @transform_5, window_bounds = array<i64: 13, 32>}, {pipeline_mode = #tpu.pipeline_mode<synchronous>, transform_indices = @transform_6, window_bounds = array<i64: 1, 32>}, {transform_indices = @transform_7, window_bounds = array<i64: 8, 32>}]} {
    %c0 = arith.constant 0 : index
    %c0_0 = arith.constant 0 : index
    %0 = vector.load %arg1[%c0, %c0_0] : memref<8x32xbf16, #tpu.memory_space<vmem>>, vector<8x32xbf16>
    %c0_1 = arith.constant 0 : index
    %c0_2 = arith.constant 0 : index
    %1 = vector.load %arg2[%c0_1, %c0_2] : memref<8x1xf32, #tpu.memory_space<vmem>>, vector<8x1xf32>
    %c0_3 = arith.constant 0 : index
    %c0_4 = arith.constant 0 : index
    %2 = vector.load %arg3[%c0_3, %c0_4] : memref<8x13xbf16, #tpu.memory_space<vmem>>, vector<8x13xbf16>
    %c0_5 = arith.constant 0 : index
    %c0_6 = arith.constant 0 : index
    %3 = vector.load %arg4[%c0_5, %c0_6] : memref<32x32xbf16, #tpu.memory_space<vmem>>, vector<32x32xbf16>
    %c0_7 = arith.constant 0 : index
    %c0_8 = arith.constant 0 : index
    %4 = vector.load %arg5[%c0_7, %c0_8] : memref<1x32xf32, #tpu.memory_space<vmem>>, vector<1x32xf32>
    %c0_9 = arith.constant 0 : index
    %c0_10 = arith.constant 0 : index
    %5 = vector.load %arg6[%c0_9, %c0_10] : memref<13x32xbf16, #tpu.memory_space<vmem>>, vector<13x32xbf16>
    %c0_11 = arith.constant 0 : index
    %c0_12 = arith.constant 0 : index
    %6 = vector.load %arg7[%c0_11, %c0_12] : memref<1x32xf32, #tpu.memory_space<vmem>>, vector<1x32xf32>
    %cst = arith.constant dense<0.000000e+00> : vector<8x32xf32>
    %7 = tpu.matmul %0, %3, %cst {dimension_numbers = #tpu.dot_dimension_numbers<[1], [0], [0], [1], [0, 0, 1, 1], [], []>} : vector<8x32xbf16>, vector<32x32xbf16>, vector<8x32xf32> -> vector<8x32xf32>
    %8 = vector.broadcast %1 : vector<8x1xf32> to vector<8x32xf32>
    %9 = vector.broadcast %4 : vector<1x32xf32> to vector<8x32xf32>
    %10 = arith.mulf %8, %9 : vector<8x32xf32>
    %cst_13 = arith.constant 1.000000e-16 : f32
    %11 = vector.broadcast %cst_13 : f32 to vector<8x32xf32>
    %12 = arith.maximumf %10, %11 : vector<8x32xf32>
    %13 = math.rsqrt %12 : vector<8x32xf32>
    %cst_14 = arith.constant dense<0.000000e+00> : vector<8x32xf32>
    %14 = tpu.matmul %2, %5, %cst_14 {dimension_numbers = #tpu.dot_dimension_numbers<[1], [0], [0], [1], [0, 0, 1, 1], [], []>} : vector<8x13xbf16>, vector<13x32xbf16>, vector<8x32xf32> -> vector<8x32xf32>
    %15 = arith.mulf %7, %13 : vector<8x32xf32>
    %16 = vector.broadcast %6 : vector<1x32xf32> to vector<8x32xf32>
    %17 = arith.addf %16, %15 : vector<8x32xf32>
    %18 = arith.addf %17, %14 : vector<8x32xf32>
    %c0_15 = arith.constant 0 : index
    %c0_16 = arith.constant 0 : index
    %19 = vector.load %arg8[%c0_15, %c0_16] : memref<8x32xf32, #tpu.memory_space<vmem>>, vector<8x32xf32>
    tpu.vector_store %arg8[%c0_15, %c0_16], %18 {strides = array<i32>} : memref<8x32xf32, #tpu.memory_space<vmem>>, vector<8x32xf32>,
    return
  }
  func.func @transform_0(%arg0: i32) -> (i32, i32) {
    %c0_i32 = arith.constant 0 : i32
    %c0_i32_0 = arith.constant 0 : i32
    return %arg0, %c0_i32 : i32, i32
  }
  func.func @transform_1(%arg0: i32) -> (i32, i32) {
    %c0_i32 = arith.constant 0 : i32
    %c0_i32_0 = arith.constant 0 : i32
    return %arg0, %c0_i32 : i32, i32
  }
  func.func @transform_2(%arg0: i32) -> (i32, i32) {
    %c0_i32 = arith.constant 0 : i32
    %c0_i32_0 = arith.constant 0 : i32
    return %arg0, %c0_i32 : i32, i32
  }
  func.func @transform_3(%arg0: i32) -> (i32, i32) {
    %c0_i32 = arith.constant 0 : i32
    %c0_i32_0 = arith.constant 0 : i32
    %c0_i32_1 = arith.constant 0 : i32
    return %c0_i32, %c0_i32_0 : i32, i32
  }
  func.func @transform_4(%arg0: i32) -> (i32, i32) {
    %c0_i32 = arith.constant 0 : i32
    %c0_i32_0 = arith.constant 0 : i32
    %c0_i32_1 = arith.constant 0 : i32
    return %c0_i32, %c0_i32_0 : i32, i32
  }
  func.func @transform_5(%arg0: i32) -> (i32, i32) {
    %c0_i32 = arith.constant 0 : i32
    %c0_i32_0 = arith.constant 0 : i32
    %c0_i32_1 = arith.constant 0 : i32
    return %c0_i32, %c0_i32_0 : i32, i32
  }
  func.func @transform_6(%arg0: i32) -> (i32, i32) {
    %c0_i32 = arith.constant 0 : i32
    %c0_i32_0 = arith.constant 0 : i32
    %c0_i32_1 = arith.constant 0 : i32
    return %c0_i32, %c0_i32_0 : i32, i32
  }
  func.func @transform_7(%arg0: i32) -> (i32, i32) {
    %c0_i32 = arith.constant 0 : i32
    %c0_i32_0 = arith.constant 0 : i32
    return %arg0, %c0_i32 : i32, i32
  }
}

</mosaic_0001>

<llo_original>
// kernel: proto_embedding_with_audio.1
$region0: #{proto_embedding_with_audio.1}
  #allocation0 [shape = 'u32[]', space=smem, size = 0x4, offset = 0x4, fixed_abs, tag = 'smem constant byte address 0x4 - core index']
  #allocation1 [shape = 'u32[144,128]{1,0:T(1,128)}', space=vmem, size = 0x12000, scoped, tag = 'internal scratch']
  %s0 = inlined_call_operand.vmem [shape: bf16[8,32], index: 0, kind: input, shape index: {}]
  %s1 = inlined_call_operand.vmem [shape: f32[8,1], index: 1, kind: input, shape index: {}]
  %s2 = inlined_call_operand.vmem [shape: bf16[8,13], index: 2, kind: input, shape index: {}]
  %s3 = inlined_call_operand.vmem [shape: bf16[32,32], index: 3, kind: input, shape index: {}]
  %s4 = inlined_call_operand.vmem [shape: f32[1,32], index: 4, kind: input, shape index: {}]
  %s5 = inlined_call_operand.vmem [shape: bf16[13,32], index: 5, kind: input, shape index: {}]
  %s6 = inlined_call_operand.vmem [shape: f32[1,32], index: 6, kind: input, shape index: {}]
  %s7 = inlined_call_operand.hbm [shape: f32[8,32], index: 7, kind: output, shape index: {}]
  %s8 = sld [smem:[#allocation0]]
  $region38: #{proto_embedding_with_audio.1} parent=0
    _
  %s10 = ssub.s32 1, %s8
  %s11 = scalar_select 0, %s10, %s8
  $region1: #{proto_embedding_with_audio.1} parent=0
    #allocation2 [shape = 'u8[4096]{0}', space=vmem, size = 0x1000, scoped, tag = 'output window, operand 0, single buffered']
    #allocation3 [shape = 's32[1]{0}', space=sflag, size = 0x4, scoped, tag = 'scoped memory for proto_embedding_with_audio.1']
    %12 = vsyncpa [#allocation3], 0
    // Predicated region
    $region2: #{proto_embedding_with_audio.1} parent=1 // pred_check
      _
    $region3: #{proto_embedding_with_audio.1} parent=1 // pred_check_branch
      %14 = sbr.rel (0) target = $region5
    $region4: #{proto_embedding_with_audio.1} parent=1 // pred_region
      _
    $region5: #{proto_embedding_with_audio.1} parent=1 // pred_fallthru
      _
    // Predicated region
    $region6: #{proto_embedding_with_audio.1} parent=1 // pred_check
      _
    $region7: #{proto_embedding_with_audio.1} parent=1 // pred_check_branch
      %16 = sbr.rel (0) target = $region9
    $region8: #{proto_embedding_with_audio.1} parent=1 // pred_region
      _
    $region9: #{proto_embedding_with_audio.1} parent=1 // pred_fallthru
      _
    // Predicated region
    $region10: #{proto_embedding_with_audio.1} parent=1 // pred_check
      _
    $region11: #{proto_embedding_with_audio.1} parent=1 // pred_check_branch
      %18 = sbr.rel (0) target = $region13
    $region12: #{proto_embedding_with_audio.1} parent=1 // pred_region
      _
    $region13: #{proto_embedding_with_audio.1} parent=1 // pred_fallthru
      _
    // Predicated region
    $region14: #{proto_embedding_with_audio.1} parent=1 // pred_check
      _
    $region15: #{proto_embedding_with_audio.1} parent=1 // pred_check_branch
      %20 = sbr.rel (0) target = $region17
    $region16: #{proto_embedding_with_audio.1} parent=1 // pred_region
      _
    $region17: #{proto_embedding_with_audio.1} parent=1 // pred_fallthru
      _
    // Predicated region
    $region18: #{proto_embedding_with_audio.1} parent=1 // pred_check
      _
    $region19: #{proto_embedding_with_audio.1} parent=1 // pred_check_branch
      %22 = sbr.rel (0) target = $region21
    $region20: #{proto_embedding_with_audio.1} parent=1 // pred_region
      _
    $region21: #{proto_embedding_with_audio.1} parent=1 // pred_fallthru
      _
    // Predicated region
    $region22: #{proto_embedding_with_audio.1} parent=1 // pred_check
      _
    $region23: #{proto_embedding_with_audio.1} parent=1 // pred_check_branch
      %24 = sbr.rel (0) target = $region25
    $region24: #{proto_embedding_with_audio.1} parent=1 // pred_region
      _
    $region25: #{proto_embedding_with_audio.1} parent=1 // pred_fallthru
      _
    // Predicated region
    $region26: #{proto_embedding_with_audio.1} parent=1 // pred_check
      _
    $region27: #{proto_embedding_with_audio.1} parent=1 // pred_check_branch
      %26 = sbr.rel (0) target = $region29
    $region28: #{proto_embedding_with_audio.1} parent=1 // pred_region
      _
    $region29: #{proto_embedding_with_audio.1} parent=1 // pred_fallthru
      _
    %v28 = vld [vmem:[%s0] sm:$0xf]
    %v29 = vld [vmem:[%s1] sm:$0xff]
    %v30 = vld [vmem:[%s2] sm:$0xf]
    %v31 = vld [vmem:[%s3] sm:$0xf]
    %v32 = vld [vmem:[%s3 + $0x4] sm:$0xf]
    %v33 = vld [vmem:[%s3 + $0x8] sm:$0xf]
    %v34 = vld [vmem:[%s3 + $0xc] sm:$0xf]
    %v35 = vld [vmem:[%s4] sm:$0x1]
    %v36 = vld [vmem:[%s5] sm:$0xf]
    %v37 = vld [vmem:[%s5 + $0x4] sm:$0x7]
    %v38 = vld [vmem:[%s6] sm:$0x1]
    %v43 = vunpack.c.l.b16 %v31
    %v44 = vunpack.c.l.b16 %v32
    %v45 = vunpack.c.l.b16 %v33
    %v46 = vunpack.c.l.b16 %v34
    %v47 = vpack.c.b16 %v44, %v43
    %v48 = vpack.c.b16 %v46, %v45
    %vm51 = vcmask 261120
    %v53 = vsel %vm51, %v28, 0
    %55 = vmatprep.subr.bf16.mxu0 0
    %56 = vmatpush1.bf16.msra.mxu0 %v47
    %57 = vmatprep.subr.bf16.mxu0 0
    %58 = vmatpush1.bf16.msra.mxu0 %v48
    %59 = vmatprep.subr.bf16.mxu0 0
    %60 = vmatpush1.bf16.msra.mxu0 0
    %61 = vmatprep.subr.bf16.mxu0 0
    %62 = vmatpush1.bf16.msra.mxu0 0
    %63 = vmatprep.subr.bf16.mxu0 0
    %64 = vmatpush1.bf16.msra.mxu0 0
    %65 = vmatprep.subr.bf16.mxu0 0
    %66 = vmatpush1.bf16.msra.mxu0 0
    %67 = vmatprep.subr.bf16.mxu0 0
    %68 = vmatpush1.bf16.msra.mxu0 0
    %69 = vmatprep.subr.bf16.mxu0 0
    %70 = vmatpush1.bf16.msra.mxu0 0
    %71 = vmatprep.subr.bf16.mxu0 0
    %72 = vmatpush1.bf16.msra.mxu0 0
    %73 = vmatprep.subr.bf16.mxu0 0
    %74 = vmatpush1.bf16.msra.mxu0 0
    %75 = vmatprep.subr.bf16.mxu0 0
    %76 = vmatpush1.bf16.msra.mxu0 0
    %77 = vmatprep.subr.bf16.mxu0 0
    %78 = vmatpush1.bf16.msra.mxu0 0
    %79 = vmatprep.subr.bf16.mxu0 0
    %80 = vmatpush1.bf16.msra.mxu0 0
    %81 = vmatprep.subr.bf16.mxu0 0
    %82 = vmatpush1.bf16.msra.mxu0 0
    %83 = vmatprep.subr.bf16.mxu0 0
    %84 = vmatpush1.bf16.msra.mxu0 0
    %85 = vmatprep.subr.bf16.mxu0 0
    %86 = vmatpush1.bf16.msra.mxu0 0
    %87 = vmatprep.mubr.bf16.mxu0 0
    %88 = vmatmul.mubr.bf16.gmra.mrb[0].mxu0 %v53
    %v89 = vpop.f32.mrb[0].mxu0
    %v90 = vadd.f32 0.0, %v89
    %v91 = vpop.f32.mrb[0].mxu0
    %v92 = vpop.f32.mrb[0].mxu0
    %v93 = vpop.f32.mrb[0].mxu0
    %94 = vdwg.mxu0
    %96 = vset.pattern.permute.xlu0 0
    %97 = vperm.xlu0 %96, %v29
    %v98 = vpop.permute.xlu0 %97
    %v101 = vlaneseq
    %v102 = vshrl.u32 %v101, 7
    %v103 = vsub.s32 0, %v102
    %v104 = vrot.slane %v35, %v103
    %v106 = vmul.f32 %v98, %v104
    %v107 = vmax.f32 %v106, 1e-16
    %v108 = vrsqrt.pop %v107
    %v111 = vunpack.c.l.b16 %v36
    %v112 = vunpack.c.l.b16 %v37
    %v113 = vpack.c.b16 %v112, %v111
    %vm114 = vcmask 105472
    %v116 = vsel %vm114, %v30, 0
    %vm118 = vcmask 1045504
    %vm119 = vcmask 1046528
    %v120 = vsel %vm118, 4294967295, 65535
    %v121 = vsel %vm119, %v120, 0
    %v123 = vand.u32 %v113, %v121
    %125 = vmatprep.subr.bf16.mxu0 0
    %126 = vmatpush1.bf16.msra.mxu0 %v123
    %127 = vmatprep.subr.bf16.mxu0 0
    %128 = vmatpush1.bf16.msra.mxu0 0
    %129 = vmatprep.subr.bf16.mxu0 0
    %130 = vmatpush1.bf16.msra.mxu0 0
    %131 = vmatprep.subr.bf16.mxu0 0
    %132 = vmatpush1.bf16.msra.mxu0 0
    %133 = vmatprep.subr.bf16.mxu0 0
    %134 = vmatpush1.bf16.msra.mxu0 0
    %135 = vmatprep.subr.bf16.mxu0 0
    %136 = vmatpush1.bf16.msra.mxu0 0
    %137 = vmatprep.subr.bf16.mxu0 0
    %138 = vmatpush1.bf16.msra.mxu0 0
    %139 = vmatprep.subr.bf16.mxu0 0
    %140 = vmatpush1.bf16.msra.mxu0 0
    %141 = vmatprep.subr.bf16.mxu0 0
    %142 = vmatpush1.bf16.msra.mxu0 0
    %143 = vmatprep.subr.bf16.mxu0 0
    %144 = vmatpush1.bf16.msra.mxu0 0
    %145 = vmatprep.subr.bf16.mxu0 0
    %146 = vmatpush1.bf16.msra.mxu0 0
    %147 = vmatprep.subr.bf16.mxu0 0
    %148 = vmatpush1.bf16.msra.mxu0 0
    %149 = vmatprep.subr.bf16.mxu0 0
    %150 = vmatpush1.bf16.msra.mxu0 0
    %151 = vmatprep.subr.bf16.mxu0 0
    %152 = vmatpush1.bf16.msra.mxu0 0
    %153 = vmatprep.subr.bf16.mxu0 0
    %154 = vmatpush1.bf16.msra.mxu0 0
    %155 = vmatprep.subr.bf16.mxu0 0
    %156 = vmatpush1.bf16.msra.mxu0 0
    %157 = vmatprep.mubr.bf16.mxu0 0
    %158 = vmatmul.mubr.bf16.gmra.mrb[0].mxu0 %v116
    %v159 = vpop.f32.mrb[0].mxu0
    %v160 = vadd.f32 0.0, %v159
    %v161 = vpop.f32.mrb[0].mxu0
    %v162 = vpop.f32.mrb[0].mxu0
    %v163 = vpop.f32.mrb[0].mxu0
    %164 = vdwg.mxu0
    %v165 = vmul.f32 %v90, %v108
    %v167 = vlaneseq
    %v168 = vshrl.u32 %v167, 7
    %v169 = vsub.s32 0, %v168
    %v170 = vrot.slane %v38, %v169
    %v172 = vadd.f32 %v170, %v165
    %v173 = vadd.f32 %v172, %v160
    %174 = vst.msk [vmem:[#allocation2] sm:$0xff] %vm51, %v173
    // Predicated region
    $region30: #{proto_embedding_with_audio.1} parent=1 // pred_check
      _
    $region31: #{proto_embedding_with_audio.1} parent=1 // pred_check_branch
      %176 = sbr.rel (0) target = $region33
    $region32: #{proto_embedding_with_audio.1} parent=1 // pred_region
      %s178 = ssub.s32 128, 128
      %179 = vsyncadd [#allocation3], %s178
      %s181 = sshll.u32 [#allocation2], 4
      %s182 = int_to_ptr.vmem [resolvable:$true] %s181
      %184 = dma.vmem_to_hbm [thread:$0]  %s182, 128, %s7, [#allocation3]
    $region33: #{proto_embedding_with_audio.1} parent=1 // pred_fallthru
      _
    // Predicated region
    $region34: #{proto_embedding_with_audio.1} parent=1 // pred_check
      _
    $region35: #{proto_embedding_with_audio.1} parent=1 // pred_check_branch
      %186 = sbr.rel (0) target = $region37
    $region36: #{proto_embedding_with_audio.1} parent=1 // pred_region
      %187 = dma.done [#allocation3], 128
    $region37: #{proto_embedding_with_audio.1} parent=1 // pred_fallthru
      _
    %188 = vsyncpa [#allocation3], 1

</llo_original>
